<compile_context>
chip_gen: v6e
topology: v6e:2x2x1
jax: 0.10.0
libtpu: 0.0.40
codegen_flags: <defaults>
</compile_context>

<pallas_src>
import functools

import jax
import jax.numpy as jnp
from jax.experimental import pallas as pl
from jax.experimental.pallas import tpu as pltpu

HID = 64              # SimpleActor/SimpleCritic hidden_dim
FUSED_HID = 2 * HID   # actor|critic hidden concatenated -> one 128-lane slab
OUT_W = 128           # lane-dense fused output slab: [logits | value | zero pad]


def _round_up(x, m):
    return (x + m - 1) // m * m


def _acn_fused_kernel(x_ref, w1_ref, w2_ref, b_ref, out_ref):
    """Fused actor+critic MLP for one [TB, obs_dim] obs tile.

    Layer 1: one [obs_dim, 128] matmul (actor|critic first layers side by side).
    Layer 2: one block-diagonal [128, 128] matmul -> lane-dense [TB, 128] slab
             (cols [0:action_dim) = logits, col action_dim = value).
    Biases live in a single (2, 128) f32 buffer; bias add + ReLU stay f32
    (v5e-safe). Accumulation is f32 regardless of compute/output dtype.
    """
    x = x_ref[...].astype(w1_ref.dtype)        # in-kernel cast (no extra HBM pass)
    h = jnp.dot(x, w1_ref[...], preferred_element_type=jnp.float32)
    h = jnp.maximum(h + b_ref[0:1, :], 0.0)
    out = jnp.dot(h.astype(w2_ref.dtype), w2_ref[...],
                  preferred_element_type=jnp.float32)
    out_ref[...] = (out + b_ref[1:2, :]).astype(out_ref.dtype)


def pack_params(params, compute_dtype=jnp.bfloat16):
    """Pack the 8 Linear tensors into 3 lane-dense slabs. Call ONCE at model init.

    bf16 weights are recommended on every generation (v5e/v6e/v7x): the MXU takes
    bf16 natively and bias-add/ReLU stay f32 in the kernel.
    """
    obs_dim, hid = params["w1a"].shape
    action_dim = params["w2a"].shape[1]
    assert hid == HID and params["w1c"].shape[1] == HID
    assert action_dim + 1 <= OUT_W, "fused output slab is 128 lanes wide"

    # Layer-1 weights: [obs_dim, 128] = [w1a | w1c].
    w1p = jnp.concatenate([params["w1a"], params["w1c"]], axis=1)

    # Layer-2 weights: block-diagonal [128, 128]; off-blocks are EXACT zeros so
    # the critic column is never contaminated by actor hidden units (and vice versa).
    w2p = jnp.zeros((FUSED_HID, OUT_W), jnp.float32)
    w2p = w2p.at[:HID, :action_dim].set(params["w2a"])
    w2p = w2p.at[HID:, action_dim:action_dim + 1].set(params["w2c"])

    # Biases: row 0 = layer-1 bias (actor|critic), row 1 = layer-2 bias laid out
    # in output-slab order. Kept in f32.
    b1 = jnp.concatenate([params["b1a"].reshape(-1), params["b1c"].reshape(-1)])
    b2 = jnp.zeros((OUT_W,), jnp.float32)
    b2 = b2.at[:action_dim].set(params["b2a"].reshape(-1))
    b2 = b2.at[action_dim].set(params["b2c"].reshape(-1)[0])
    bp = jnp.stack([b1, b2]).astype(jnp.float32)

    return {
        "w1p": w1p.astype(compute_dtype),
        "w2p": w2p.astype(compute_dtype),
        "bp": bp,
        "action_dim": int(action_dim),
    }


@functools.partial(jax.jit, static_argnames=("action_dim", "block_b", "out_dtype"))
def _acn_forward_impl(obs, w1p, w2p, bp, *, action_dim, block_b, out_dtype):
    B, obs_dim = obs.shape
    obs_bytes = obs.dtype.itemsize
    out_bytes = jnp.dtype(out_dtype).itemsize

    # Sublane-packing-friendly row tile: 16 if any streamed array is sub-32-bit.
    row_req = 8 if (obs_bytes >= 4 and out_bytes >= 4) else 16

    # Batch tile: big (block_b default 2048; mem-bound -> fewer ~0.35us grid steps),
    # but capped at ceil(B/2) so large batches always give >=2 "parallel" tiles
    # (keeps both TensorCores busy on v7x). Tiny batches collapse to one
    # full-extent block (always layout-legal).
    TB = min(_round_up(block_b, row_req), _round_up(pl.cdiv(B, 2), row_req))
    if TB >= B:
        TB = B
    grid = pl.cdiv(B, TB)

    w_hbm = (w1p.size * w1p.dtype.itemsize + w2p.size * w2p.dtype.itemsize
             + bp.size * bp.dtype.itemsize)
    cost = pl.CostEstimate(
        flops=2 * B * (obs_dim * FUSED_HID + FUSED_HID * OUT_W),
        transcendentals=0,
        bytes_accessed=B * (obs_dim * obs_bytes + OUT_W * out_bytes) + w_hbm,
    )

    out = pl.pallas_call(
        _acn_fused_kernel,
        out_shape=jax.ShapeDtypeStruct((B, OUT_W), out_dtype),
        grid_spec=pltpu.PrefetchScalarGridSpec(
            num_scalar_prefetch=0,
            grid=(grid,),
            in_specs=[
                # obs tiles stream / double-buffer along the batch grid axis.
                # Last dim = full obs_dim (legal even if not a multiple of 128),
                # so no K padding and no garbage K lanes.
                pl.BlockSpec((TB, obs_dim), lambda i: (i, 0)),
                # Packed weights & biases: constant index_map -> VMEM-resident.
                pl.BlockSpec((obs_dim, FUSED_HID), lambda i: (0, 0)),
                pl.BlockSpec((FUSED_HID, OUT_W), lambda i: (0, 0)),
                pl.BlockSpec((2, OUT_W), lambda i: (0, 0)),
            ],
            out_specs=pl.BlockSpec((TB, OUT_W), lambda i: (i, 0)),
        ),
        compiler_params=pltpu.CompilerParams(
            dimension_semantics=("parallel",)),
        cost_estimate=cost,
    )(obs, w1p, w2p, bp)

    # Slice inside the same jit so XLA fuses the split with the slab consumer.
    logits = out[:, :action_dim]
    value = out[:, action_dim:action_dim + 1]
    return logits, value


def acn_forward(obs, packed, memory=None, *, action_type="Continuous",
                block_b=2048, out_dtype=None):
    """Pallas implementation of ACNModel.forward ('Continuous' branch).

    `packed` comes from pack_params() (call it once at init, not per step).
    out_dtype defaults to bf16 when the packed weights are bf16 (halves the
    dominant output HBM stream); accumulation is always f32 in-kernel.
    """
    if action_type != "Continuous":
        # TODO(synk): 'Discrete' branch needs the Encoder conv network, whose
        # definition is not provided in the reference module.
        raise NotImplementedError("Only the 'Continuous' branch is implemented.")

    if out_dtype is None:
        out_dtype = (jnp.bfloat16 if packed["w1p"].dtype == jnp.bfloat16
                     else jnp.float32)

    logits, value = _acn_forward_impl(
        obs, packed["w1p"], packed["w2p"], packed["bp"],
        action_dim=packed["action_dim"], block_b=block_b, out_dtype=out_dtype)
    return logits, value, memory


def init_params(key, obs_dim, action_dim, hidden=HID):
    """Deterministic synthetic parameters (same shapes as the PyTorch Linear layers)."""
    ks = jax.random.split(key, 8)

    def lin(kw, kb, fan_in, fan_out):
        bound = 1.0 / jnp.sqrt(fan_in)
        w = jax.random.uniform(kw, (fan_in, fan_out), jnp.float32, -bound, bound)
        b = jax.random.uniform(kb, (1, fan_out), jnp.float32, -bound, bound)
        return w, b

    w1a, b1a = lin(ks[0], ks[1], obs_dim, hidden)
    w2a, b2a = lin(ks[2], ks[3], hidden, action_dim)
    w1c, b1c = lin(ks[4], ks[5], obs_dim, hidden)
    w2c, b2c = lin(ks[6], ks[7], hidden, 1)
    return dict(w1a=w1a, b1a=b1a, w2a=w2a, b2a=b2a,
                w1c=w1c, b1c=b1c, w2c=w2c, b2c=b2c)


if __name__ == "__main__":
    key = jax.random.PRNGKey(0)
    k_obs, k_par, k_obs2 = jax.random.split(key, 3)

    B, obs_dim, action_dim = 8, 32, 8
    obs = jax.random.normal(k_obs, (B, obs_dim), jnp.float32)
    params = init_params(k_par, obs_dim, action_dim)

    # Pure-JAX reference (same math as the PyTorch module).
    def reference(o):
        ha = jnp.maximum(o @ params["w1a"] + params["b1a"], 0.0)
        hc = jnp.maximum(o @ params["w1c"] + params["b1c"], 0.0)
        return ha @ params["w2a"] + params["b2a"], hc @ params["w2c"] + params["b2c"]

    # ---- f32 compute / f32 out: tight correctness check ----
    packed_f32 = pack_params(params, compute_dtype=jnp.float32)   # once, at "init"
    logits, state_value, memory = acn_forward(obs, packed_f32, memory=None,
                                              out_dtype=jnp.float32)
    jax.block_until_ready((logits, state_value))
    ref_logits, ref_value = reference(obs)
    assert logits.shape == (B, action_dim)
    assert state_value.shape == (B, 1)
    assert memory is None
    assert jnp.allclose(logits, ref_logits, atol=1e-4, rtol=1e-5)
    assert jnp.allclose(state_value, ref_value, atol=1e-4, rtol=1e-5)

    # ---- ragged batch (partial final block, no host-side padding copy) ----
    B2 = 50
    obs2 = jax.random.normal(k_obs2, (B2, obs_dim), jnp.float32)
    lg2, val2, _ = acn_forward(obs2, packed_f32, out_dtype=jnp.float32)
    jax.block_until_ready((lg2, val2))
    ref_lg2, ref_val2 = reference(obs2)
    assert lg2.shape == (B2, action_dim) and val2.shape == (B2, 1)
    assert jnp.allclose(lg2, ref_lg2, atol=1e-4, rtol=1e-5)
    assert jnp.allclose(val2, ref_val2, atol=1e-4, rtol=1e-5)

    # ---- bf16 compute + bf16 output slab (recommended on v5e/v6e/v7x) ----
    packed_bf16 = pack_params(params, compute_dtype=jnp.bfloat16)
    lg16, val16, _ = acn_forward(obs, packed_bf16)     # out_dtype -> bf16
    jax.block_until_ready((lg16, val16))
    # Check bf16 path against the f32 path (not just isfinite).
    assert jnp.allclose(lg16.astype(jnp.float32), logits, atol=5e-2, rtol=5e-2)
    assert jnp.allclose(val16.astype(jnp.float32), state_value, atol=5e-2, rtol=5e-2)

    print("KERNEL_OK")
</pallas_src>

<mosaic_0001>
module attributes {stable_mosaic.version = 11 : i64} {
  func.func @_acn_fused_kernel(%arg0: i32, %arg1: memref<8x32xf32, #tpu.memory_space<vmem>>, %arg2: memref<32x128xf32, #tpu.memory_space<vmem>>, %arg3: memref<128x128xf32, #tpu.memory_space<vmem>>, %arg4: memref<2x128xf32, #tpu.memory_space<vmem>>, %arg5: memref<8x128xf32, #tpu.memory_space<vmem>>) attributes {dimension_semantics = [#tpu.dimension_semantics<parallel>], iteration_bounds = array<i64: 1>, scalar_prefetch = 0 : i64, scratch_operands = 0 : i64, tpu.core_type = #tpu.core_type<tc>, window_params = [{transform_indices = @transform_0, window_bounds = array<i64: 8, 32>}, {pipeline_mode = #tpu.pipeline_mode<synchronous>, transform_indices = @transform_1, window_bounds = array<i64: 32, 128>}, {pipeline_mode = #tpu.pipeline_mode<synchronous>, transform_indices = @transform_2, window_bounds = array<i64: 128, 128>}, {pipeline_mode = #tpu.pipeline_mode<synchronous>, transform_indices = @transform_3, window_bounds = array<i64: 2, 128>}, {transform_indices = @transform_4, window_bounds = array<i64: 8, 128>}]} {
    %c0 = arith.constant 0 : index
    %c0_0 = arith.constant 0 : index
    %0 = vector.load %arg1[%c0, %c0_0] : memref<8x32xf32, #tpu.memory_space<vmem>>, vector<8x32xf32>
    %c0_1 = arith.constant 0 : index
    %c0_2 = arith.constant 0 : index
    %1 = vector.load %arg2[%c0_1, %c0_2] : memref<32x128xf32, #tpu.memory_space<vmem>>, vector<32x128xf32>
    %cst = arith.constant dense<0.000000e+00> : vector<8x128xf32>
    %2 = tpu.matmul %0, %1, %cst {dimension_numbers = #tpu.dot_dimension_numbers<[1], [0], [0], [1], [0, 0, 1, 1], [], []>} : vector<8x32xf32>, vector<32x128xf32>, vector<8x128xf32> -> vector<8x128xf32>
    %c0_3 = arith.constant 0 : index
    %c0_4 = arith.constant 0 : index
    %3 = vector.load %arg4[%c0_3, %c0_4] : memref<2x128xf32, #tpu.memory_space<vmem>>, vector<1x128xf32>
    %4 = vector.broadcast %3 : vector<1x128xf32> to vector<8x128xf32>
    %5 = arith.addf %2, %4 : vector<8x128xf32>
    %cst_5 = arith.constant 0.000000e+00 : f32
    %6 = vector.broadcast %cst_5 : f32 to vector<8x128xf32>
    %7 = arith.maximumf %5, %6 : vector<8x128xf32>
    %c0_6 = arith.constant 0 : index
    %c0_7 = arith.constant 0 : index
    %8 = vector.load %arg3[%c0_6, %c0_7] : memref<128x128xf32, #tpu.memory_space<vmem>>, vector<128x128xf32>
    %cst_8 = arith.constant dense<0.000000e+00> : vector<8x128xf32>
    %9 = tpu.matmul %7, %8, %cst_8 {dimension_numbers = #tpu.dot_dimension_numbers<[1], [0], [0], [1], [0, 0, 1, 1], [], []>} : vector<8x128xf32>, vector<128x128xf32>, vector<8x128xf32> -> vector<8x128xf32>
    %c1 = arith.constant 1 : index
    %c0_9 = arith.constant 0 : index
    %10 = vector.load %arg4[%c1, %c0_9] : memref<2x128xf32, #tpu.memory_space<vmem>>, vector<1x128xf32>
    %11 = vector.broadcast %10 : vector<1x128xf32> to vector<8x128xf32>
    %12 = arith.addf %9, %11 : vector<8x128xf32>
    %c0_10 = arith.constant 0 : index
    %c0_11 = arith.constant 0 : index
    %13 = vector.load %arg5[%c0_10, %c0_11] : memref<8x128xf32, #tpu.memory_space<vmem>>, vector<8x128xf32>
    tpu.vector_store %arg5[%c0_10, %c0_11], %12 {strides = array<i32>} : memref<8x128xf32, #tpu.memory_space<vmem>>, vector<8x128xf32>,
    return
  }
  func.func @transform_0(%arg0: i32) -> (i32, i32) {
    %c0_i32 = arith.constant 0 : i32
    %c0_i32_0 = arith.constant 0 : i32
    return %arg0, %c0_i32 : i32, i32
  }
  func.func @transform_1(%arg0: i32) -> (i32, i32) {
    %c0_i32 = arith.constant 0 : i32
    %c0_i32_0 = arith.constant 0 : i32
    %c0_i32_1 = arith.constant 0 : i32
    return %c0_i32, %c0_i32_0 : i32, i32
  }
  func.func @transform_2(%arg0: i32) -> (i32, i32) {
    %c0_i32 = arith.constant 0 : i32
    %c0_i32_0 = arith.constant 0 : i32
    %c0_i32_1 = arith.constant 0 : i32
    return %c0_i32, %c0_i32_0 : i32, i32
  }
  func.func @transform_3(%arg0: i32) -> (i32, i32) {
    %c0_i32 = arith.constant 0 : i32
    %c0_i32_0 = arith.constant 0 : i32
    %c0_i32_1 = arith.constant 0 : i32
    return %c0_i32, %c0_i32_0 : i32, i32
  }
  func.func @transform_4(%arg0: i32) -> (i32, i32) {
    %c0_i32 = arith.constant 0 : i32
    %c0_i32_0 = arith.constant 0 : i32
    return %arg0, %c0_i32 : i32, i32
  }
}

</mosaic_0001>

<llo_original>
// kernel: _acn_forward_impl.1
$region0: #{_acn_forward_impl.1}
  #allocation0 [shape = 'u32[]', space=smem, size = 0x4, offset = 0x4, fixed_abs, tag = 'smem constant byte address 0x4 - core index']
  #allocation1 [shape = 'u32[144,128]{1,0:T(1,128)}', space=vmem, size = 0x12000, scoped, tag = 'internal scratch']
  %s0 = inlined_call_operand.hbm [shape: f32[8,32], index: 0, kind: input, shape index: {}]
  %s1 = inlined_call_operand.hbm [shape: f32[32,128], index: 1, kind: input, shape index: {}]
  %s2 = inlined_call_operand.hbm [shape: f32[128,128], index: 2, kind: input, shape index: {}]
  %s3 = inlined_call_operand.vmem [shape: f32[2,128], index: 3, kind: input, shape index: {}]
  %s4 = inlined_call_operand.vmem [shape: f32[8,128], index: 4, kind: output, shape index: {}]
  %s5 = sld [smem:[#allocation0]]
  $region38: #{_acn_forward_impl.1} parent=0
    _
  %s7 = ssub.s32 1, %s5
  %s8 = scalar_select 0, %s7, %s5
  $region1: #{_acn_forward_impl.1} parent=0
    #allocation2 [shape = 'u8[4096]{0}', space=vmem, size = 0x1000, scoped, tag = 'input window, operand 0, single buffered']
    #allocation3 [shape = 's32[1]{0}', space=sflag, size = 0x4, scoped, tag = 'scoped memory for _acn_forward_impl.1']
    #allocation4 [shape = 'u8[16384]{0}', space=vmem, size = 0x4000, scoped, tag = 'input window, operand 1, single buffered']
    #allocation5 [shape = 's32[1]{0}', space=sflag, size = 0x4, scoped, tag = 'scoped memory for _acn_forward_impl.1']
    #allocation6 [shape = 'u8[65536]{0}', space=vmem, size = 0x10000, scoped, tag = 'input window, operand 2, single buffered']
    %9 = vsyncpa [#allocation3], 0
    %10 = vsyncpa [#allocation5], 0
    // Predicated region
    $region2: #{_acn_forward_impl.1} parent=1 // pred_check
      _
    $region3: #{_acn_forward_impl.1} parent=1 // pred_check_branch
      %12 = sbr.rel (0) target = $region5
    $region4: #{_acn_forward_impl.1} parent=1 // pred_region
      %s14 = ssub.s32 128, 128
      %15 = vsyncadd [#allocation3], %s14
      %s17 = sshll.u32 [#allocation2], 4
      %s18 = int_to_ptr.vmem [resolvable:$true] %s17
      %20 = dma.hbm_to_vmem [thread:$0]  %s0, 128, %s18, [#allocation3]
    $region5: #{_acn_forward_impl.1} parent=1 // pred_fallthru
      _
    // Predicated region
    $region6: #{_acn_forward_impl.1} parent=1 // pred_check
      _
    $region7: #{_acn_forward_impl.1} parent=1 // pred_check_branch
      %22 = sbr.rel (0) target = $region9
    $region8: #{_acn_forward_impl.1} parent=1 // pred_region
      %s24 = ssub.s32 512, 512
      %25 = vsyncadd [#allocation5], %s24
      %s26 = sshll.u32 [#allocation4], 4
      %s27 = int_to_ptr.vmem [resolvable:$true] %s26
      %32 = dma.hbm_to_vmem [thread:$0]  %s1, 512, %s27, [#allocation5], 128, 128, 8
    $region9: #{_acn_forward_impl.1} parent=1 // pred_fallthru
      _
    // Predicated region
    $region10: #{_acn_forward_impl.1} parent=1 // pred_check
      _
    $region11: #{_acn_forward_impl.1} parent=1 // pred_check_branch
      %34 = sbr.rel (0) target = $region13
    $region12: #{_acn_forward_impl.1} parent=1 // pred_region
      %s36 = ssub.s32 2048, 2048
      %37 = vsyncadd [#allocation5], %s36
      %s38 = sshll.u32 [#allocation6], 4
      %s39 = int_to_ptr.vmem [resolvable:$true] %s38
      %44 = dma.hbm_to_vmem [thread:$0]  %s2, 2048, %s39, [#allocation5], 128, 128, 8
    $region13: #{_acn_forward_impl.1} parent=1 // pred_fallthru
      _
    // Predicated region
    $region14: #{_acn_forward_impl.1} parent=1 // pred_check
      _
    $region15: #{_acn_forward_impl.1} parent=1 // pred_check_branch
      %46 = sbr.rel (0) target = $region17
    $region16: #{_acn_forward_impl.1} parent=1 // pred_region
      _
    $region17: #{_acn_forward_impl.1} parent=1 // pred_fallthru
      _
    // Predicated region
    $region18: #{_acn_forward_impl.1} parent=1 // pred_check
      _
    $region19: #{_acn_forward_impl.1} parent=1 // pred_check_branch
      %48 = sbr.rel (0) target = $region21
    $region20: #{_acn_forward_impl.1} parent=1 // pred_region
      %49 = dma.done [#allocation3], 128
    $region21: #{_acn_forward_impl.1} parent=1 // pred_fallthru
      _
    // Predicated region
    $region22: #{_acn_forward_impl.1} parent=1 // pred_check
      _
    $region23: #{_acn_forward_impl.1} parent=1 // pred_check_branch
      %51 = sbr.rel (0) target = $region25
    $region24: #{_acn_forward_impl.1} parent=1 // pred_region
      %52 = dma.done [#allocation5], 512
    $region25: #{_acn_forward_impl.1} parent=1 // pred_fallthru
      _
    // Predicated region
    $region26: #{_acn_forward_impl.1} parent=1 // pred_check
      _
    $region27: #{_acn_forward_impl.1} parent=1 // pred_check_branch
      %54 = sbr.rel (0) target = $region29
    $region28: #{_acn_forward_impl.1} parent=1 // pred_region
      %55 = dma.done [#allocation5], 2048
    $region29: #{_acn_forward_impl.1} parent=1 // pred_fallthru
      _
    %v56 = vld [vmem:[#allocation2] sm:$0xff]
    %v57 = vld [vmem:[#allocation4] sm:$0xff]
    %v58 = vld [vmem:[#allocation4 + $0x8] sm:$0xff]
    %v59 = vld [vmem:[#allocation4 + $0x10] sm:$0xff]
    %v60 = vld [vmem:[#allocation4 + $0x18] sm:$0xff]
    %v61 = vld [vmem:[%s3] sm:$0x1]
    %v62 = vlaneseq
    %v63 = vshrl.u32 %v62, 7
    %v64 = vsub.s32 0, %v63
    %v65 = vrot.slane %v61, %v64
    %vm66 = vcmask 261120
    %v68 = vsel %vm66, %v56, 0
    %70 = vmatprep.subr.mxu0 0.0
    %71 = vmatpush1.msra.mxu0 0.0
    %72 = vmatprep.subr.mxu0 0.0
    %73 = vmatpush1.msra.mxu0 0.0
    %74 = vmatprep.subr.mxu0 0.0
    %75 = vmatpush1.msra.mxu0 0.0
    %76 = vmatprep.subr.mxu0 0.0
    %77 = vmatpush1.msra.mxu0 0.0
    %78 = vmatprep.subr.mxu0 0.0
    %79 = vmatpush1.msra.mxu0 0.0
    %80 = vmatprep.subr.mxu0 0.0
    %81 = vmatpush1.msra.mxu0 0.0
    %82 = vmatprep.subr.mxu0 0.0
    %83 = vmatpush1.msra.mxu0 0.0
    %84 = vmatprep.subr.mxu0 0.0
    %85 = vmatpush1.msra.mxu0 0.0
    %86 = vmatprep.subr.mxu0 0.0
    %87 = vmatpush1.msra.mxu0 0.0
    %88 = vmatprep.subr.mxu0 0.0
    %89 = vmatpush1.msra.mxu0 0.0
    %90 = vmatprep.subr.mxu0 0.0
    %91 = vmatpush1.msra.mxu0 0.0
    %92 = vmatprep.subr.mxu0 0.0
    %93 = vmatpush1.msra.mxu0 0.0
    %94 = vmatprep.subr.mxu0 0.0
    %95 = vmatpush1.msra.mxu0 %v60
    %96 = vmatprep.subr.mxu0 0.0
    %97 = vmatpush1.msra.mxu0 %v59
    %98 = vmatprep.subr.mxu0 0.0
    %99 = vmatpush1.msra.mxu0 %v58
    %100 = vmatprep.subr.mxu0 0.0
    %101 = vmatpush1.msra.mxu0 %v57
    %102 = vmatprep.subr.mxu0 0.0
    %103 = vmatpush2.msra.mxu0 0.0
    %104 = vmatprep.subr.mxu0 0.0
    %105 = vmatpush2.msra.mxu0 0.0
    %106 = vmatprep.subr.mxu0 0.0
    %107 = vmatpush2.msra.mxu0 0.0
    %108 = vmatprep.subr.mxu0 0.0
    %109 = vmatpush2.msra.mxu0 0.0
    %110 = vmatprep.subr.mxu0 0.0
    %111 = vmatpush2.msra.mxu0 0.0
    %112 = vmatprep.subr.mxu0 0.0
    %113 = vmatpush2.msra.mxu0 0.0
    %114 = vmatprep.subr.mxu0 0.0
    %115 = vmatpush2.msra.mxu0 0.0
    %116 = vmatprep.subr.mxu0 0.0
    %117 = vmatpush2.msra.mxu0 0.0
    %118 = vmatprep.subr.mxu0 0.0
    %119 = vmatpush2.msra.mxu0 0.0
    %120 = vmatprep.subr.mxu0 0.0
    %121 = vmatpush2.msra.mxu0 0.0
    %122 = vmatprep.subr.mxu0 0.0
    %123 = vmatpush2.msra.mxu0 0.0
    %124 = vmatprep.subr.mxu0 0.0
    %125 = vmatpush2.msra.mxu0 0.0
    %126 = vmatprep.subr.mxu0 0.0
    %127 = vmatpush2.msra.mxu0 0.0
    %128 = vmatprep.subr.mxu0 0.0
    %129 = vmatpush2.msra.mxu0 0.0
    %130 = vmatprep.subr.mxu0 0.0
    %131 = vmatpush2.msra.mxu0 0.0
    %132 = vmatprep.subr.mxu0 0.0
    %133 = vmatpush2.msra.mxu0 0.0
    %134 = vmatprep.mubr.f32.mxu0 0.0
    %135 = vmatmul.mubr.f32.gmra.mxu0 %v68
    %v136 = vpop.f32.mrf.mxu0
    %v137 = vadd.f32 %v65, %v136
    %v138 = vpop.f32.mrf.mxu0
    %139 = vdwg.mxu0
    %v140 = vmax.f32 %v137, 0.0
    %v141 = vld [vmem:[#allocation6] sm:$0xff]
    %v142 = vld [vmem:[#allocation6 + $0x8] sm:$0xff]
    %v143 = vld [vmem:[#allocation6 + $0x10] sm:$0xff]
    %v144 = vld [vmem:[#allocation6 + $0x18] sm:$0xff]
    %v145 = vld [vmem:[#allocation6 + $0x20] sm:$0xff]
    %v146 = vld [vmem:[#allocation6 + $0x28] sm:$0xff]
    %v147 = vld [vmem:[#allocation6 + $0x30] sm:$0xff]
    %v148 = vld [vmem:[#allocation6 + $0x38] sm:$0xff]
    %v149 = vld [vmem:[#allocation6 + $0x40] sm:$0xff]
    %v150 = vld [vmem:[#allocation6 + $0x48] sm:$0xff]
    %v151 = vld [vmem:[#allocation6 + $0x50] sm:$0xff]
    %v152 = vld [vmem:[#allocation6 + $0x58] sm:$0xff]
    %v153 = vld [vmem:[#allocation6 + $0x60] sm:$0xff]
    %v154 = vld [vmem:[#allocation6 + $0x68] sm:$0xff]
    %v155 = vld [vmem:[#allocation6 + $0x70] sm:$0xff]
    %v156 = vld [vmem:[#allocation6 + $0x78] sm:$0xff]
    %v157 = vld [vmem:[%s3 + $0x1] sm:$0x1]
    %v158 = vlaneseq
    %v159 = vshrl.u32 %v158, 7
    %v160 = vsub.s32 0, %v159
    %v161 = vrot.slane %v157, %v160
    %162 = vmatprep.subr.mxu0 0.0
    %163 = vmatpush1.msra.mxu0 %v156
    %164 = vmatprep.subr.mxu0 0.0
    %165 = vmatpush1.msra.mxu0 %v155
    %166 = vmatprep.subr.mxu0 0.0
    %167 = vmatpush1.msra.mxu0 %v154
    %168 = vmatprep.subr.mxu0 0.0
    %169 = vmatpush1.msra.mxu0 %v153
    %170 = vmatprep.subr.mxu0 0.0
    %171 = vmatpush1.msra.mxu0 %v152
    %172 = vmatprep.subr.mxu0 0.0
    %173 = vmatpush1.msra.mxu0 %v151
    %174 = vmatprep.subr.mxu0 0.0
    %175 = vmatpush1.msra.mxu0 %v150
    %176 = vmatprep.subr.mxu0 0.0
    %177 = vmatpush1.msra.mxu0 %v149
    %178 = vmatprep.subr.mxu0 0.0
    %179 = vmatpush1.msra.mxu0 %v148
    %180 = vmatprep.subr.mxu0 0.0
    %181 = vmatpush1.msra.mxu0 %v147
    %182 = vmatprep.subr.mxu0 0.0
    %183 = vmatpush1.msra.mxu0 %v146
    %184 = vmatprep.subr.mxu0 0.0
    %185 = vmatpush1.msra.mxu0 %v145
    %186 = vmatprep.subr.mxu0 0.0
    %187 = vmatpush1.msra.mxu0 %v144
    %188 = vmatprep.subr.mxu0 0.0
    %189 = vmatpush1.msra.mxu0 %v143
    %190 = vmatprep.subr.mxu0 0.0
    %191 = vmatpush1.msra.mxu0 %v142
    %192 = vmatprep.subr.mxu0 0.0
    %193 = vmatpush1.msra.mxu0 %v141
    %194 = vmatprep.subr.mxu0 0.0
    %195 = vmatpush2.msra.mxu0 0.0
    %196 = vmatprep.subr.mxu0 0.0
    %197 = vmatpush2.msra.mxu0 0.0
    %198 = vmatprep.subr.mxu0 0.0
    %199 = vmatpush2.msra.mxu0 0.0
    %200 = vmatprep.subr.mxu0 0.0
    %201 = vmatpush2.msra.mxu0 0.0
    %202 = vmatprep.subr.mxu0 0.0
    %203 = vmatpush2.msra.mxu0 0.0
    %204 = vmatprep.subr.mxu0 0.0
    %205 = vmatpush2.msra.mxu0 0.0
    %206 = vmatprep.subr.mxu0 0.0
    %207 = vmatpush2.msra.mxu0 0.0
    %208 = vmatprep.subr.mxu0 0.0
    %209 = vmatpush2.msra.mxu0 0.0
    %210 = vmatprep.subr.mxu0 0.0
    %211 = vmatpush2.msra.mxu0 0.0
    %212 = vmatprep.subr.mxu0 0.0
    %213 = vmatpush2.msra.mxu0 0.0
    %214 = vmatprep.subr.mxu0 0.0
    %215 = vmatpush2.msra.mxu0 0.0
    %216 = vmatprep.subr.mxu0 0.0
    %217 = vmatpush2.msra.mxu0 0.0
    %218 = vmatprep.subr.mxu0 0.0
    %219 = vmatpush2.msra.mxu0 0.0
    %220 = vmatprep.subr.mxu0 0.0
    %221 = vmatpush2.msra.mxu0 0.0
    %222 = vmatprep.subr.mxu0 0.0
    %223 = vmatpush2.msra.mxu0 0.0
    %224 = vmatprep.subr.mxu0 0.0
    %225 = vmatpush2.msra.mxu0 0.0
    %226 = vmatprep.mubr.f32.mxu0 0.0
    %227 = vmatmul.mubr.f32.gmra.mxu0 %v140
    %v228 = vpop.f32.mrf.mxu0
    %v229 = vadd.f32 %v161, %v228
    %v230 = vpop.f32.mrf.mxu0
    %231 = vdwg.mxu0
    %232 = vst [vmem:[%s4] sm:$0xff] %v229
    // Predicated region
    $region30: #{_acn_forward_impl.1} parent=1 // pred_check
      _
    $region31: #{_acn_forward_impl.1} parent=1 // pred_check_branch
      %234 = sbr.rel (0) target = $region33
    $region32: #{_acn_forward_impl.1} parent=1 // pred_region
      _
    $region33: #{_acn_forward_impl.1} parent=1 // pred_fallthru
      _
    // Predicated region
    $region34: #{_acn_forward_impl.1} parent=1 // pred_check
      _
    $region35: #{_acn_forward_impl.1} parent=1 // pred_check_branch
      %236 = sbr.rel (0) target = $region37
    $region36: #{_acn_forward_impl.1} parent=1 // pred_region
      _
    $region37: #{_acn_forward_impl.1} parent=1 // pred_fallthru
      _
    %237 = vsyncpa [#allocation3], 1
    %238 = vsyncpa [#allocation5], 1

</llo_original>
